<compile_context>
chip_gen: v6e
topology: v6e:2x2x1
jax: 0.10.0
libtpu: 0.0.40
codegen_flags: <defaults>
</compile_context>

<pallas_src>
import jax
import jax.numpy as jnp
import numpy as np
from jax import lax
from jax.experimental import pallas as pl
from jax.experimental.pallas import tpu as pltpu


NODE_DIM = 32
EDGE_DIM = 6
EIN_DIM = 2 * NODE_DIM + EDGE_DIM   # 70 = cat(x_dst, x_src, x_edge)
EM_PAD = 128                        # lane-dense padded width for the em output


def _round_up(x, m):
    return ((x + m - 1) // m) * m


def mpn_kernel(dst_ref, ein_ref,
               we1_ref, be1_ref, esc_ref, esh_ref, we2p_ref, be2p_ref,
               wn1a_ref, wn1b_ref, bn1_ref, nsc_ref, nsh_ref, wn2_ref, bn2_ref,
               em_ref, nm_ref):
    n_nodes = nm_ref.shape[0]
    te = ein_ref.shape[0]

    ein = ein_ref[...]                                     # (TE, 70)

    # ---- edge_msg_encoder: Linear(70,32) -> ReLU -> BN(32) -> Linear(32,6) -> ReLU ----
    h = jnp.dot(ein, we1_ref[...], preferred_element_type=jnp.float32) + be1_ref[...]
    h = jnp.maximum(h, 0.0)
    h = h * esc_ref[...] + esh_ref[...]                    # BatchNorm folded affine (inference)
    # Column-zero-padded second Linear -> em_pad[:, 6:] == 0 exactly and the
    # (TE, 128) store is lane-dense (no vst.msk partial stores).
    em_pad = jnp.maximum(
        jnp.dot(h, we2p_ref[...], preferred_element_type=jnp.float32) + be2p_ref[...],
        0.0)                                               # (TE, 128)
    em_ref[...] = em_pad

    # ---- node_msg_encoder: Linear(38,64) -> ReLU -> BN(64) -> Linear(64,32) -> ReLU ----
    # cat(x_dst, em) @ Wn1  ==  ein @ Wn1a (rows 0:32 live) + em_pad @ Wn1b (rows 0:6 live)
    g = (jnp.dot(ein, wn1a_ref[...], preferred_element_type=jnp.float32)
         + jnp.dot(em_pad, wn1b_ref[...], preferred_element_type=jnp.float32)
         + bn1_ref[...])
    g = jnp.maximum(g, 0.0)
    g = g * nsc_ref[...] + nsh_ref[...]                    # BatchNorm folded affine (inference)
    msg = jnp.maximum(
        jnp.dot(g, wn2_ref[...], preferred_element_type=jnp.float32) + bn2_ref[...],
        0.0)                                               # (TE, 32)

    # ---- df.sum('msg', 'nm'): scatter-add messages into destination nodes.
    # One-hot block built in-kernel from this tile's int32 dst indices; padded
    # edges carry dst = -1 and match no node row (so they contribute nothing).
    node_ids = lax.broadcasted_iota(jnp.int32, (n_nodes, te), 0)        # (N, TE)
    onehot = (node_ids == dst_ref[...]).astype(jnp.float32)             # (N, TE)
    contrib = jnp.dot(onehot, msg, preferred_element_type=jnp.float32)  # (N, 32)

    @pl.when(pl.program_id(0) == 0)
    def _():
        nm_ref[...] = contrib

    @pl.when(pl.program_id(0) != 0)
    def _():
        nm_ref[...] += contrib


def mpn_forward(x_node, x_edge, src, dst, params, *, edge_tile=512):
    """Gather endpoint features, pad/tile the edge axis, call the Pallas kernel."""
    N = x_node.shape[0]
    E = x_edge.shape[0]

    # Gather endpoint features and build the 70-wide concatenated edge input once
    # (one array instead of three -> one DMA stream, one K=70 dot per tile).
    x_dst = jnp.take(x_node, dst, axis=0)                               # (E, 32)
    x_src = jnp.take(x_node, src, axis=0)                               # (E, 32)
    ein = jnp.concatenate([x_dst, x_src, x_edge], axis=1).astype(jnp.float32)  # (E, 70)

    te = edge_tile if E > edge_tile else _round_up(max(E, 8), 8)
    e_pad = _round_up(E, te)
    num_tiles = e_pad // te

    if e_pad != E:
        ein = jnp.pad(ein, ((0, e_pad - E), (0, 0)))
        dst_p = jnp.concatenate(
            [dst.astype(jnp.int32), jnp.full((e_pad - E,), -1, jnp.int32)])
    else:
        dst_p = dst.astype(jnp.int32)
    dst2d = dst_p.reshape(1, e_pad)

    # Pre-padded / split weights (built once, outside the kernel).
    we2p = jnp.zeros((32, EM_PAD), jnp.float32).at[:, :EDGE_DIM].set(params['we2'])
    be2p = jnp.zeros((1, EM_PAD), jnp.float32).at[:, :EDGE_DIM].set(params['be2'])
    wn1a = jnp.zeros((EIN_DIM, 64), jnp.float32).at[0:NODE_DIM, :].set(
        params['wn1'][0:NODE_DIM])
    wn1b = jnp.zeros((EM_PAD, 64), jnp.float32).at[0:EDGE_DIM, :].set(
        params['wn1'][NODE_DIM:NODE_DIM + EDGE_DIM])

    weights = [params['we1'], params['be1'], params['esc'], params['esh'],
               we2p, be2p, wn1a, wn1b,
               params['bn1'], params['nsc'], params['nsh'],
               params['wn2'], params['bn2']]

    def _w_spec(shape):
        nd = len(shape)
        return pl.BlockSpec(shape, lambda i, nd=nd: (0,) * nd)

    in_specs = ([pl.BlockSpec((1, te), lambda i: (0, i)),          # dst indices per tile
                 pl.BlockSpec((te, EIN_DIM), lambda i: (i, 0))]    # concatenated edge inputs
                + [_w_spec(w.shape) for w in weights])

    out_specs = (pl.BlockSpec((te, EM_PAD), lambda i: (i, 0)),     # em tiles (lane-dense)
                 pl.BlockSpec((N, NODE_DIM), lambda i: (0, 0)))    # nm VMEM-resident accumulator

    out_shapes = (jax.ShapeDtypeStruct((e_pad, EM_PAD), jnp.float32),
                  jax.ShapeDtypeStruct((N, NODE_DIM), jnp.float32))

    em_pad_out, nm = pl.pallas_call(
        mpn_kernel,
        out_shape=out_shapes,
        grid=(num_tiles,),
        in_specs=in_specs,
        out_specs=out_specs,
        compiler_params=pltpu.CompilerParams(
            dimension_semantics=("arbitrary",),        # nm accumulates across edge tiles
            vmem_limit_bytes=48 * 1024 * 1024),        # fits v7x's 64 MiB physical VMEM
    )(dst2d, ein, *weights)

    em = em_pad_out[:E, :EDGE_DIM]
    return nm, em


def init_params(key):
    ks = jax.random.split(key, 6)

    def lin(k, din, dout):
        kw, kb = jax.random.split(k)
        w = jax.random.normal(kw, (din, dout), jnp.float32) * 0.1
        b = jax.random.normal(kb, (1, dout), jnp.float32) * 0.1
        return w, b

    def bn(k, dim, eps=1e-5):
        kg, kb, km, kv = jax.random.split(k, 4)
        gamma = 1.0 + 0.1 * jax.random.normal(kg, (1, dim), jnp.float32)
        beta = 0.1 * jax.random.normal(kb, (1, dim), jnp.float32)
        mean = 0.1 * jax.random.normal(km, (1, dim), jnp.float32)
        var = 1.0 + 0.1 * jnp.abs(jax.random.normal(kv, (1, dim), jnp.float32))
        scale = gamma / jnp.sqrt(var + eps)
        shift = beta - mean * scale
        return scale, shift

    we1, be1 = lin(ks[0], 70, 32)
    esc, esh = bn(ks[1], 32)
    we2, be2 = lin(ks[2], 32, 6)
    wn1, bn1 = lin(ks[3], 38, 64)
    nsc, nsh = bn(ks[4], 64)
    wn2, bn2 = lin(ks[5], 64, 32)
    return dict(we1=we1, be1=be1, esc=esc, esh=esh, we2=we2, be2=be2,
                wn1=wn1, bn1=bn1, nsc=nsc, nsh=nsh, wn2=wn2, bn2=bn2)


def reference_forward(x_node, x_edge, src, dst, p):
    """Pure-JAX reference of the same semantics (for correctness checking)."""
    N = x_node.shape[0]
    x_dst = x_node[dst]
    x_src = x_node[src]
    ein = jnp.concatenate([x_dst, x_src, x_edge], axis=1)           # (E, 70)
    h = jnp.maximum(ein @ p['we1'] + p['be1'], 0.0)
    h = h * p['esc'] + p['esh']
    em = jnp.maximum(h @ p['we2'] + p['be2'], 0.0)                  # (E, 6)
    nin = jnp.concatenate([x_dst, em], axis=1)                      # (E, 38)
    g = jnp.maximum(nin @ p['wn1'] + p['bn1'], 0.0)
    g = g * p['nsc'] + p['nsh']
    msg = jnp.maximum(g @ p['wn2'] + p['bn2'], 0.0)                 # (E, 32)
    nm = jnp.zeros((N, 32), jnp.float32).at[dst].add(msg)           # (N, 32)
    return nm, em


def _check(x_node, x_edge, src, dst, params, **kw):
    nm, em = mpn_forward(x_node, x_edge, src, dst, params, **kw)
    nm = jax.block_until_ready(nm)
    em = jax.block_until_ready(em)
    nm_ref, em_ref = reference_forward(x_node, x_edge, src, dst, params)
    np.testing.assert_allclose(np.asarray(em), np.asarray(em_ref), rtol=1e-4, atol=1e-4)
    np.testing.assert_allclose(np.asarray(nm), np.asarray(nm_ref), rtol=1e-4, atol=1e-4)
    return nm, em


if __name__ == "__main__":
    key = jax.random.PRNGKey(0)
    k_node, k_edge, k_params, k_g2 = jax.random.split(key, 4)
    params = init_params(k_params)

    # Test 1: small synthetic graph, 4 nodes, 8 directed edges (single tile).
    N, E = 4, 8
    src = jnp.array([0, 1, 2, 3, 1, 2, 3, 0], dtype=jnp.int32)
    dst = jnp.array([1, 2, 3, 0, 0, 1, 2, 3], dtype=jnp.int32)
    x_node = jax.random.normal(k_node, (N, NODE_DIM), jnp.float32)
    x_edge = jax.random.normal(k_edge, (E, EDGE_DIM), jnp.float32)
    nm, em = _check(x_node, x_edge, src, dst, params)
    assert nm.shape == (N, NODE_DIM) and em.shape == (E, EDGE_DIM)

    # Test 2: slightly larger graph with a small edge tile to exercise the
    # multi-tile pipeline, edge-axis padding and the VMEM nm accumulator.
    k1, k2, k3, k4 = jax.random.split(k_g2, 4)
    N2, E2 = 20, 300
    src2 = jax.random.randint(k1, (E2,), 0, N2, dtype=jnp.int32)
    dst2 = jax.random.randint(k2, (E2,), 0, N2, dtype=jnp.int32)
    x_node2 = jax.random.normal(k3, (N2, NODE_DIM), jnp.float32)
    x_edge2 = jax.random.normal(k4, (E2, EDGE_DIM), jnp.float32)
    _check(x_node2, x_edge2, src2, dst2, params, edge_tile=128)

    print("KERNEL_OK")
</pallas_src>

<mosaic_0001>
module attributes {stable_mosaic.version = 11 : i64} {
  func.func @mpn_kernel(%arg0: i32, %arg1: memref<1x8xi32, #tpu.memory_space<vmem>>, %arg2: memref<8x70xf32, #tpu.memory_space<vmem>>, %arg3: memref<70x32xf32, #tpu.memory_space<vmem>>, %arg4: memref<1x32xf32, #tpu.memory_space<vmem>>, %arg5: memref<1x32xf32, #tpu.memory_space<vmem>>, %arg6: memref<1x32xf32, #tpu.memory_space<vmem>>, %arg7: memref<32x128xf32, #tpu.memory_space<vmem>>, %arg8: memref<1x128xf32, #tpu.memory_space<vmem>>, %arg9: memref<70x64xf32, #tpu.memory_space<vmem>>, %arg10: memref<128x64xf32, #tpu.memory_space<vmem>>, %arg11: memref<1x64xf32, #tpu.memory_space<vmem>>, %arg12: memref<1x64xf32, #tpu.memory_space<vmem>>, %arg13: memref<1x64xf32, #tpu.memory_space<vmem>>, %arg14: memref<64x32xf32, #tpu.memory_space<vmem>>, %arg15: memref<1x32xf32, #tpu.memory_space<vmem>>, %arg16: memref<8x128xf32, #tpu.memory_space<vmem>>, %arg17: memref<4x32xf32, #tpu.memory_space<vmem>>) attributes {dimension_semantics = [#tpu.dimension_semantics<arbitrary>], iteration_bounds = array<i64: 1>, scalar_prefetch = 0 : i64, scratch_operands = 0 : i64, tpu.core_type = #tpu.core_type<tc>, window_params = [{transform_indices = @transform_0, window_bounds = array<i64: 1, 8>}, {transform_indices = @transform_1, window_bounds = array<i64: 8, 70>}, {pipeline_mode = #tpu.pipeline_mode<synchronous>, transform_indices = @transform_2, window_bounds = array<i64: 70, 32>}, {pipeline_mode = #tpu.pipeline_mode<synchronous>, transform_indices = @transform_3, window_bounds = array<i64: 1, 32>}, {pipeline_mode = #tpu.pipeline_mode<synchronous>, transform_indices = @transform_4, window_bounds = array<i64: 1, 32>}, {pipeline_mode = #tpu.pipeline_mode<synchronous>, transform_indices = @transform_5, window_bounds = array<i64: 1, 32>}, {pipeline_mode = #tpu.pipeline_mode<synchronous>, transform_indices = @transform_6, window_bounds = array<i64: 32, 128>}, {pipeline_mode = #tpu.pipeline_mode<synchronous>, transform_indices = @transform_7, window_bounds = array<i64: 1, 128>}, {pipeline_mode = #tpu.pipeline_mode<synchronous>, transform_indices = @transform_8, window_bounds = array<i64: 70, 64>}, {pipeline_mode = #tpu.pipeline_mode<synchronous>, transform_indices = @transform_9, window_bounds = array<i64: 128, 64>}, {pipeline_mode = #tpu.pipeline_mode<synchronous>, transform_indices = @transform_10, window_bounds = array<i64: 1, 64>}, {pipeline_mode = #tpu.pipeline_mode<synchronous>, transform_indices = @transform_11, window_bounds = array<i64: 1, 64>}, {pipeline_mode = #tpu.pipeline_mode<synchronous>, transform_indices = @transform_12, window_bounds = array<i64: 1, 64>}, {pipeline_mode = #tpu.pipeline_mode<synchronous>, transform_indices = @transform_13, window_bounds = array<i64: 64, 32>}, {pipeline_mode = #tpu.pipeline_mode<synchronous>, transform_indices = @transform_14, window_bounds = array<i64: 1, 32>}, {transform_indices = @transform_15, window_bounds = array<i64: 8, 128>}, {pipeline_mode = #tpu.pipeline_mode<synchronous>, transform_indices = @transform_16, window_bounds = array<i64: 4, 32>}]} {
    %c0 = arith.constant 0 : index
    %c0_0 = arith.constant 0 : index
    %0 = vector.load %arg2[%c0, %c0_0] : memref<8x70xf32, #tpu.memory_space<vmem>>, vector<8x70xf32>
    %c0_1 = arith.constant 0 : index
    %c0_2 = arith.constant 0 : index
    %1 = vector.load %arg3[%c0_1, %c0_2] : memref<70x32xf32, #tpu.memory_space<vmem>>, vector<70x32xf32>
    %cst = arith.constant dense<0.000000e+00> : vector<8x32xf32>
    %2 = tpu.matmul %0, %1, %cst {dimension_numbers = #tpu.dot_dimension_numbers<[1], [0], [0], [1], [0, 0, 1, 1], [], []>} : vector<8x70xf32>, vector<70x32xf32>, vector<8x32xf32> -> vector<8x32xf32>
    %c0_3 = arith.constant 0 : index
    %c0_4 = arith.constant 0 : index
    %3 = vector.load %arg4[%c0_3, %c0_4] : memref<1x32xf32, #tpu.memory_space<vmem>>, vector<1x32xf32>
    %4 = vector.broadcast %3 : vector<1x32xf32> to vector<8x32xf32>
    %5 = arith.addf %2, %4 : vector<8x32xf32>
    %cst_5 = arith.constant 0.000000e+00 : f32
    %6 = vector.broadcast %cst_5 : f32 to vector<8x32xf32>
    %7 = arith.maximumf %5, %6 : vector<8x32xf32>
    %c0_6 = arith.constant 0 : index
    %c0_7 = arith.constant 0 : index
    %8 = vector.load %arg5[%c0_6, %c0_7] : memref<1x32xf32, #tpu.memory_space<vmem>>, vector<1x32xf32>
    %9 = vector.broadcast %8 : vector<1x32xf32> to vector<8x32xf32>
    %10 = arith.mulf %7, %9 : vector<8x32xf32>
    %c0_8 = arith.constant 0 : index
    %c0_9 = arith.constant 0 : index
    %11 = vector.load %arg6[%c0_8, %c0_9] : memref<1x32xf32, #tpu.memory_space<vmem>>, vector<1x32xf32>
    %12 = vector.broadcast %11 : vector<1x32xf32> to vector<8x32xf32>
    %13 = arith.addf %10, %12 : vector<8x32xf32>
    %c0_10 = arith.constant 0 : index
    %c0_11 = arith.constant 0 : index
    %14 = vector.load %arg7[%c0_10, %c0_11] : memref<32x128xf32, #tpu.memory_space<vmem>>, vector<32x128xf32>
    %cst_12 = arith.constant dense<0.000000e+00> : vector<8x128xf32>
    %15 = tpu.matmul %13, %14, %cst_12 {dimension_numbers = #tpu.dot_dimension_numbers<[1], [0], [0], [1], [0, 0, 1, 1], [], []>} : vector<8x32xf32>, vector<32x128xf32>, vector<8x128xf32> -> vector<8x128xf32>
    %c0_13 = arith.constant 0 : index
    %c0_14 = arith.constant 0 : index
    %16 = vector.load %arg8[%c0_13, %c0_14] : memref<1x128xf32, #tpu.memory_space<vmem>>, vector<1x128xf32>
    %17 = vector.broadcast %16 : vector<1x128xf32> to vector<8x128xf32>
    %18 = arith.addf %15, %17 : vector<8x128xf32>
    %cst_15 = arith.constant 0.000000e+00 : f32
    %19 = vector.broadcast %cst_15 : f32 to vector<8x128xf32>
    %20 = arith.maximumf %18, %19 : vector<8x128xf32>
    %c0_16 = arith.constant 0 : index
    %c0_17 = arith.constant 0 : index
    %21 = vector.load %arg16[%c0_16, %c0_17] : memref<8x128xf32, #tpu.memory_space<vmem>>, vector<8x128xf32>
    tpu.vector_store %arg16[%c0_16, %c0_17], %20 {strides = array<i32>} : memref<8x128xf32, #tpu.memory_space<vmem>>, vector<8x128xf32>,
    %c0_18 = arith.constant 0 : index
    %c0_19 = arith.constant 0 : index
    %22 = vector.load %arg9[%c0_18, %c0_19] : memref<70x64xf32, #tpu.memory_space<vmem>>, vector<70x64xf32>
    %cst_20 = arith.constant dense<0.000000e+00> : vector<8x64xf32>
    %23 = tpu.matmul %0, %22, %cst_20 {dimension_numbers = #tpu.dot_dimension_numbers<[1], [0], [0], [1], [0, 0, 1, 1], [], []>} : vector<8x70xf32>, vector<70x64xf32>, vector<8x64xf32> -> vector<8x64xf32>
    %c0_21 = arith.constant 0 : index
    %c0_22 = arith.constant 0 : index
    %24 = vector.load %arg10[%c0_21, %c0_22] : memref<128x64xf32, #tpu.memory_space<vmem>>, vector<128x64xf32>
    %cst_23 = arith.constant dense<0.000000e+00> : vector<8x64xf32>
    %25 = tpu.matmul %20, %24, %cst_23 {dimension_numbers = #tpu.dot_dimension_numbers<[1], [0], [0], [1], [0, 0, 1, 1], [], []>} : vector<8x128xf32>, vector<128x64xf32>, vector<8x64xf32> -> vector<8x64xf32>
    %26 = arith.addf %23, %25 : vector<8x64xf32>
    %c0_24 = arith.constant 0 : index
    %c0_25 = arith.constant 0 : index
    %27 = vector.load %arg11[%c0_24, %c0_25] : memref<1x64xf32, #tpu.memory_space<vmem>>, vector<1x64xf32>
    %28 = vector.broadcast %27 : vector<1x64xf32> to vector<8x64xf32>
    %29 = arith.addf %26, %28 : vector<8x64xf32>
    %cst_26 = arith.constant 0.000000e+00 : f32
    %30 = vector.broadcast %cst_26 : f32 to vector<8x64xf32>
    %31 = arith.maximumf %29, %30 : vector<8x64xf32>
    %c0_27 = arith.constant 0 : index
    %c0_28 = arith.constant 0 : index
    %32 = vector.load %arg12[%c0_27, %c0_28] : memref<1x64xf32, #tpu.memory_space<vmem>>, vector<1x64xf32>
    %33 = vector.broadcast %32 : vector<1x64xf32> to vector<8x64xf32>
    %34 = arith.mulf %31, %33 : vector<8x64xf32>
    %c0_29 = arith.constant 0 : index
    %c0_30 = arith.constant 0 : index
    %35 = vector.load %arg13[%c0_29, %c0_30] : memref<1x64xf32, #tpu.memory_space<vmem>>, vector<1x64xf32>
    %36 = vector.broadcast %35 : vector<1x64xf32> to vector<8x64xf32>
    %37 = arith.addf %34, %36 : vector<8x64xf32>
    %c0_31 = arith.constant 0 : index
    %c0_32 = arith.constant 0 : index
    %38 = vector.load %arg14[%c0_31, %c0_32] : memref<64x32xf32, #tpu.memory_space<vmem>>, vector<64x32xf32>
    %cst_33 = arith.constant dense<0.000000e+00> : vector<8x32xf32>
    %39 = tpu.matmul %37, %38, %cst_33 {dimension_numbers = #tpu.dot_dimension_numbers<[1], [0], [0], [1], [0, 0, 1, 1], [], []>} : vector<8x64xf32>, vector<64x32xf32>, vector<8x32xf32> -> vector<8x32xf32>
    %c0_34 = arith.constant 0 : index
    %c0_35 = arith.constant 0 : index
    %40 = vector.load %arg15[%c0_34, %c0_35] : memref<1x32xf32, #tpu.memory_space<vmem>>, vector<1x32xf32>
    %41 = vector.broadcast %40 : vector<1x32xf32> to vector<8x32xf32>
    %42 = arith.addf %39, %41 : vector<8x32xf32>
    %cst_36 = arith.constant 0.000000e+00 : f32
    %43 = vector.broadcast %cst_36 : f32 to vector<8x32xf32>
    %44 = arith.maximumf %42, %43 : vector<8x32xf32>
    %45 = tpu.iota {dimensions = array<i32: 0>} : vector<4x8xi32>
    %c0_37 = arith.constant 0 : index
    %c0_38 = arith.constant 0 : index
    %46 = vector.load %arg1[%c0_37, %c0_38] : memref<1x8xi32, #tpu.memory_space<vmem>>, vector<1x8xi32>
    %47 = vector.broadcast %46 : vector<1x8xi32> to vector<4x8xi32>
    %48 = arith.cmpi eq, %45, %47 : vector<4x8xi32>
    %49 = arith.extui %48 : vector<4x8xi1> to vector<4x8xi32>
    %50 = arith.sitofp %49 : vector<4x8xi32> to vector<4x8xf32>
    %cst_39 = arith.constant dense<0.000000e+00> : vector<4x32xf32>
    %51 = tpu.matmul %50, %44, %cst_39 {dimension_numbers = #tpu.dot_dimension_numbers<[1], [0], [0], [1], [0, 0, 1, 1], [], []>} : vector<4x8xf32>, vector<8x32xf32>, vector<4x32xf32> -> vector<4x32xf32>
    %c0_i32 = arith.constant 0 : i32
    %52 = arith.cmpi eq, %arg0, %c0_i32 : i32
    %53 = arith.extui %52 : i1 to i32
    %c0_i32_40 = arith.constant 0 : i32
    %54 = arith.cmpi ne, %53, %c0_i32_40 : i32
    scf.if %54 {
      %c0_43 = arith.constant 0 : index
      %c0_44 = arith.constant 0 : index
      %58 = vector.load %arg17[%c0_43, %c0_44] : memref<4x32xf32, #tpu.memory_space<vmem>>, vector<4x32xf32>
      tpu.vector_store %arg17[%c0_43, %c0_44], %51 {strides = array<i32>} : memref<4x32xf32, #tpu.memory_space<vmem>>, vector<4x32xf32>,
    } else {
    }
    %c0_i32_41 = arith.constant 0 : i32
    %55 = arith.cmpi ne, %arg0, %c0_i32_41 : i32
    %56 = arith.extui %55 : i1 to i32
    %c0_i32_42 = arith.constant 0 : i32
    %57 = arith.cmpi ne, %56, %c0_i32_42 : i32
    scf.if %57 {
      %c0_43 = arith.constant 0 : index
      %c0_44 = arith.constant 0 : index
      %58 = vector.load %arg17[%c0_43, %c0_44] : memref<4x32xf32, #tpu.memory_space<vmem>>, vector<4x32xf32>
      %59 = arith.addf %58, %51 : vector<4x32xf32>
      %c0_45 = arith.constant 0 : index
      %c0_46 = arith.constant 0 : index
      %60 = vector.load %arg17[%c0_45, %c0_46] : memref<4x32xf32, #tpu.memory_space<vmem>>, vector<4x32xf32>
      tpu.vector_store %arg17[%c0_45, %c0_46], %59 {strides = array<i32>} : memref<4x32xf32, #tpu.memory_space<vmem>>, vector<4x32xf32>,
    } else {
    }
    return
  }
  func.func @transform_0(%arg0: i32) -> (i32, i32) {
    %c0_i32 = arith.constant 0 : i32
    %c0_i32_0 = arith.constant 0 : i32
    return %c0_i32, %arg0 : i32, i32
  }
  func.func @transform_1(%arg0: i32) -> (i32, i32) {
    %c0_i32 = arith.constant 0 : i32
    %c0_i32_0 = arith.constant 0 : i32
    return %arg0, %c0_i32 : i32, i32
  }
  func.func @transform_2(%arg0: i32) -> (i32, i32) {
    %c0_i32 = arith.constant 0 : i32
    %c0_i32_0 = arith.constant 0 : i32
    %c0_i32_1 = arith.constant 0 : i32
    return %c0_i32, %c0_i32_0 : i32, i32
  }
  func.func @transform_3(%arg0: i32) -> (i32, i32) {
    %c0_i32 = arith.constant 0 : i32
    %c0_i32_0 = arith.constant 0 : i32
    %c0_i32_1 = arith.constant 0 : i32
    return %c0_i32, %c0_i32_0 : i32, i32
  }
  func.func @transform_4(%arg0: i32) -> (i32, i32) {
    %c0_i32 = arith.constant 0 : i32
    %c0_i32_0 = arith.constant 0 : i32
    %c0_i32_1 = arith.constant 0 : i32
    return %c0_i32, %c0_i32_0 : i32, i32
  }
  func.func @transform_5(%arg0: i32) -> (i32, i32) {
    %c0_i32 = arith.constant 0 : i32
    %c0_i32_0 = arith.constant 0 : i32
    %c0_i32_1 = arith.constant 0 : i32
    return %c0_i32, %c0_i32_0 : i32, i32
  }
  func.func @transform_6(%arg0: i32) -> (i32, i32) {
    %c0_i32 = arith.constant 0 : i32
    %c0_i32_0 = arith.constant 0 : i32
    %c0_i32_1 = arith.constant 0 : i32
    return %c0_i32, %c0_i32_0 : i32, i32
  }
  func.func @transform_7(%arg0: i32) -> (i32, i32) {
    %c0_i32 = arith.constant 0 : i32
    %c0_i32_0 = arith.constant 0 : i32
    %c0_i32_1 = arith.constant 0 : i32
    return %c0_i32, %c0_i32_0 : i32, i32
  }
  func.func @transform_8(%arg0: i32) -> (i32, i32) {
    %c0_i32 = arith.constant 0 : i32
    %c0_i32_0 = arith.constant 0 : i32
    %c0_i32_1 = arith.constant 0 : i32
    return %c0_i32, %c0_i32_0 : i32, i32
  }
  func.func @transform_9(%arg0: i32) -> (i32, i32) {
    %c0_i32 = arith.constant 0 : i32
    %c0_i32_0 = arith.constant 0 : i32
    %c0_i32_1 = arith.constant 0 : i32
    return %c0_i32, %c0_i32_0 : i32, i32
  }
  func.func @transform_10(%arg0: i32) -> (i32, i32) {
    %c0_i32 = arith.constant 0 : i32
    %c0_i32_0 = arith.constant 0 : i32
    %c0_i32_1 = arith.constant 0 : i32
    return %c0_i32, %c0_i32_0 : i32, i32
  }
  func.func @transform_11(%arg0: i32) -> (i32, i32) {
    %c0_i32 = arith.constant 0 : i32
    %c0_i32_0 = arith.constant 0 : i32
    %c0_i32_1 = arith.constant 0 : i32
    return %c0_i32, %c0_i32_0 : i32, i32
  }
  func.func @transform_12(%arg0: i32) -> (i32, i32) {
    %c0_i32 = arith.constant 0 : i32
    %c0_i32_0 = arith.constant 0 : i32
    %c0_i32_1 = arith.constant 0 : i32
    return %c0_i32, %c0_i32_0 : i32, i32
  }
  func.func @transform_13(%arg0: i32) -> (i32, i32) {
    %c0_i32 = arith.constant 0 : i32
    %c0_i32_0 = arith.constant 0 : i32
    %c0_i32_1 = arith.constant 0 : i32
    return %c0_i32, %c0_i32_0 : i32, i32
  }
  func.func @transform_14(%arg0: i32) -> (i32, i32) {
    %c0_i32 = arith.constant 0 : i32
    %c0_i32_0 = arith.constant 0 : i32
    %c0_i32_1 = arith.constant 0 : i32
    return %c0_i32, %c0_i32_0 : i32, i32
  }
  func.func @transform_15(%arg0: i32) -> (i32, i32) {
    %c0_i32 = arith.constant 0 : i32
    %c0_i32_0 = arith.constant 0 : i32
    return %arg0, %c0_i32 : i32, i32
  }
  func.func @transform_16(%arg0: i32) -> (i32, i32) {
    %c0_i32 = arith.constant 0 : i32
    %c0_i32_0 = arith.constant 0 : i32
    %c0_i32_1 = arith.constant 0 : i32
    return %c0_i32, %c0_i32_0 : i32, i32
  }
}

</mosaic_0001>

<llo_original>
// kernel: tpu_custom_call.1
$region0: #{tpu_custom_call.1}
  #allocation0 [shape = 'u32[]', space=smem, size = 0x4, offset = 0x4, fixed_abs, tag = 'smem constant byte address 0x4 - core index']
  #allocation1 [shape = 'u32[144,128]{1,0:T(1,128)}', space=vmem, size = 0x12000, scoped, tag = 'internal scratch']
  %s0 = inlined_call_operand.vmem [shape: s32[1,8], index: 0, kind: input, shape index: {}]
  %s1 = inlined_call_operand.vmem [shape: f32[8,70], index: 1, kind: input, shape index: {}]
  %s2 = inlined_call_operand.vmem [shape: f32[70,32], index: 2, kind: input, shape index: {}]
  %s3 = inlined_call_operand.vmem [shape: f32[1,32], index: 3, kind: input, shape index: {}]
  %s4 = inlined_call_operand.vmem [shape: f32[1,32], index: 4, kind: input, shape index: {}]
  %s5 = inlined_call_operand.vmem [shape: f32[1,32], index: 5, kind: input, shape index: {}]
  %s6 = inlined_call_operand.vmem [shape: f32[32,128], index: 6, kind: input, shape index: {}]
  %s7 = inlined_call_operand.vmem [shape: f32[1,128], index: 7, kind: input, shape index: {}]
  %s8 = inlined_call_operand.vmem [shape: f32[70,64], index: 8, kind: input, shape index: {}]
  %s9 = inlined_call_operand.vmem [shape: f32[128,64], index: 9, kind: input, shape index: {}]
  %s10 = inlined_call_operand.vmem [shape: f32[1,64], index: 10, kind: input, shape index: {}]
  %s11 = inlined_call_operand.vmem [shape: f32[1,64], index: 11, kind: input, shape index: {}]
  %s12 = inlined_call_operand.vmem [shape: f32[1,64], index: 12, kind: input, shape index: {}]
  %s13 = inlined_call_operand.vmem [shape: f32[64,32], index: 13, kind: input, shape index: {}]
  %s14 = inlined_call_operand.vmem [shape: f32[1,32], index: 14, kind: input, shape index: {}]
  %s15 = inlined_call_operand.hbm [shape: f32[8,128], index: 15, kind: output, shape index: {0}]
  %s16 = inlined_call_operand.hbm [shape: f32[4,32], index: 16, kind: output, shape index: {1}]
  %17 = xla_tuple %s15, %s16
  %s18 = sld [smem:[#allocation0]]
  $region86: #{tpu_custom_call.1} parent=0
    _
  %s20 = ssub.s32 1, %s18
  %s21 = scalar_select 0, %s20, %s18
  $region1: #{tpu_custom_call.1} parent=0
    #allocation2 [shape = 'u8[4096]{0}', space=vmem, size = 0x1000, scoped, tag = 'output window, operand 0, single buffered']
    #allocation3 [shape = 's32[1]{0}', space=sflag, size = 0x4, scoped, tag = 'scoped memory for tpu_custom_call.1']
    #allocation4 [shape = 'u8[2048]{0}', space=vmem, size = 0x800, scoped, tag = 'output window, operand 1, single buffered']
    #allocation5 [shape = 's32[1]{0}', space=sflag, size = 0x4, scoped, tag = 'scoped memory for tpu_custom_call.1']
    %22 = vsyncpa [#allocation3], 0
    %23 = vsyncpa [#allocation5], 0
    // Predicated region
    $region2: #{tpu_custom_call.1} parent=1 // pred_check
      _
    $region3: #{tpu_custom_call.1} parent=1 // pred_check_branch
      %25 = sbr.rel (0) target = $region5
    $region4: #{tpu_custom_call.1} parent=1 // pred_region
      _
    $region5: #{tpu_custom_call.1} parent=1 // pred_fallthru
      _
    // Predicated region
    $region6: #{tpu_custom_call.1} parent=1 // pred_check
      _
    $region7: #{tpu_custom_call.1} parent=1 // pred_check_branch
      %27 = sbr.rel (0) target = $region9
    $region8: #{tpu_custom_call.1} parent=1 // pred_region
      _
    $region9: #{tpu_custom_call.1} parent=1 // pred_fallthru
      _
    // Predicated region
    $region10: #{tpu_custom_call.1} parent=1 // pred_check
      _
    $region11: #{tpu_custom_call.1} parent=1 // pred_check_branch
      %29 = sbr.rel (0) target = $region13
    $region12: #{tpu_custom_call.1} parent=1 // pred_region
      _
    $region13: #{tpu_custom_call.1} parent=1 // pred_fallthru
      _
    // Predicated region
    $region14: #{tpu_custom_call.1} parent=1 // pred_check
      _
    $region15: #{tpu_custom_call.1} parent=1 // pred_check_branch
      %31 = sbr.rel (0) target = $region17
    $region16: #{tpu_custom_call.1} parent=1 // pred_region
      _
    $region17: #{tpu_custom_call.1} parent=1 // pred_fallthru
      _
    // Predicated region
    $region18: #{tpu_custom_call.1} parent=1 // pred_check
      _
    $region19: #{tpu_custom_call.1} parent=1 // pred_check_branch
      %33 = sbr.rel (0) target = $region21
    $region20: #{tpu_custom_call.1} parent=1 // pred_region
      _
    $region21: #{tpu_custom_call.1} parent=1 // pred_fallthru
      _
    // Predicated region
    $region22: #{tpu_custom_call.1} parent=1 // pred_check
      _
    $region23: #{tpu_custom_call.1} parent=1 // pred_check_branch
      %35 = sbr.rel (0) target = $region25
    $region24: #{tpu_custom_call.1} parent=1 // pred_region
      _
    $region25: #{tpu_custom_call.1} parent=1 // pred_fallthru
      _
    // Predicated region
    $region26: #{tpu_custom_call.1} parent=1 // pred_check
      _
    $region27: #{tpu_custom_call.1} parent=1 // pred_check_branch
      %37 = sbr.rel (0) target = $region29
    $region28: #{tpu_custom_call.1} parent=1 // pred_region
      _
    $region29: #{tpu_custom_call.1} parent=1 // pred_fallthru
      _
    // Predicated region
    $region30: #{tpu_custom_call.1} parent=1 // pred_check
      _
    $region31: #{tpu_custom_call.1} parent=1 // pred_check_branch
      %39 = sbr.rel (0) target = $region33
    $region32: #{tpu_custom_call.1} parent=1 // pred_region
      _
    $region33: #{tpu_custom_call.1} parent=1 // pred_fallthru
      _
    // Predicated region
    $region34: #{tpu_custom_call.1} parent=1 // pred_check
      _
    $region35: #{tpu_custom_call.1} parent=1 // pred_check_branch
      %41 = sbr.rel (0) target = $region37
    $region36: #{tpu_custom_call.1} parent=1 // pred_region
      _
    $region37: #{tpu_custom_call.1} parent=1 // pred_fallthru
      _
    // Predicated region
    $region38: #{tpu_custom_call.1} parent=1 // pred_check
      _
    $region39: #{tpu_custom_call.1} parent=1 // pred_check_branch
      %43 = sbr.rel (0) target = $region41
    $region40: #{tpu_custom_call.1} parent=1 // pred_region
      _
    $region41: #{tpu_custom_call.1} parent=1 // pred_fallthru
      _
    // Predicated region
    $region42: #{tpu_custom_call.1} parent=1 // pred_check
      _
    $region43: #{tpu_custom_call.1} parent=1 // pred_check_branch
      %45 = sbr.rel (0) target = $region45
    $region44: #{tpu_custom_call.1} parent=1 // pred_region
      _
    $region45: #{tpu_custom_call.1} parent=1 // pred_fallthru
      _
    // Predicated region
    $region46: #{tpu_custom_call.1} parent=1 // pred_check
      _
    $region47: #{tpu_custom_call.1} parent=1 // pred_check_branch
      %47 = sbr.rel (0) target = $region49
    $region48: #{tpu_custom_call.1} parent=1 // pred_region
      _
    $region49: #{tpu_custom_call.1} parent=1 // pred_fallthru
      _
    // Predicated region
    $region50: #{tpu_custom_call.1} parent=1 // pred_check
      _
    $region51: #{tpu_custom_call.1} parent=1 // pred_check_branch
      %49 = sbr.rel (0) target = $region53
    $region52: #{tpu_custom_call.1} parent=1 // pred_region
      _
    $region53: #{tpu_custom_call.1} parent=1 // pred_fallthru
      _
    // Predicated region
    $region54: #{tpu_custom_call.1} parent=1 // pred_check
      _
    $region55: #{tpu_custom_call.1} parent=1 // pred_check_branch
      %51 = sbr.rel (0) target = $region57
    $region56: #{tpu_custom_call.1} parent=1 // pred_region
      _
    $region57: #{tpu_custom_call.1} parent=1 // pred_fallthru
      _
    // Predicated region
    $region58: #{tpu_custom_call.1} parent=1 // pred_check
      _
    $region59: #{tpu_custom_call.1} parent=1 // pred_check_branch
      %53 = sbr.rel (0) target = $region61
    $region60: #{tpu_custom_call.1} parent=1 // pred_region
      _
    $region61: #{tpu_custom_call.1} parent=1 // pred_fallthru
      _
    %v54 = vld [vmem:[%s1] sm:$0xff]
    %v55 = vld [vmem:[%s2] sm:$0xff]
    %v56 = vld [vmem:[%s2 + $0x8] sm:$0xff]
    %v57 = vld [vmem:[%s2 + $0x10] sm:$0xff]
    %v58 = vld [vmem:[%s2 + $0x18] sm:$0xff]
    %v59 = vld [vmem:[%s2 + $0x20] sm:$0xff]
    %v60 = vld [vmem:[%s2 + $0x28] sm:$0xff]
    %v61 = vld [vmem:[%s2 + $0x30] sm:$0xff]
    %v62 = vld [vmem:[%s2 + $0x38] sm:$0xff]
    %v63 = vld [vmem:[%s2 + $0x40] sm:$0x3f]
    %v64 = vld [vmem:[%s3] sm:$0x1]
    %v66 = vlaneseq
    %v67 = vshrl.u32 %v66, 7
    %v68 = vsub.s32 0, %v67
    %v69 = vrot.slane %v64, %v68
    %vm71 = vcmask 572416
    %v73 = vsel %vm71, %v54, 0
    %vm75 = vcmask 1045504
    %v77 = vsel %vm75, %v63, 0
    %79 = vmatprep.subr.mxu0 0.0
    %80 = vmatpush1.msra.mxu0 0.0
    %81 = vmatprep.subr.mxu0 0.0
    %82 = vmatpush1.msra.mxu0 0.0
    %83 = vmatprep.subr.mxu0 0.0
    %84 = vmatpush1.msra.mxu0 0.0
    %85 = vmatprep.subr.mxu0 0.0
    %86 = vmatpush1.msra.mxu0 0.0
    %87 = vmatprep.subr.mxu0 0.0
    %88 = vmatpush1.msra.mxu0 0.0
    %89 = vmatprep.subr.mxu0 0.0
    %90 = vmatpush1.msra.mxu0 0.0
    %91 = vmatprep.subr.mxu0 0.0
    %92 = vmatpush1.msra.mxu0 0.0
    %93 = vmatprep.subr.mxu0 0.0
    %94 = vmatpush1.msra.mxu0 %v77
    %95 = vmatprep.subr.mxu0 0.0
    %96 = vmatpush1.msra.mxu0 %v62
    %97 = vmatprep.subr.mxu0 0.0
    %98 = vmatpush1.msra.mxu0 %v61
    %99 = vmatprep.subr.mxu0 0.0
    %100 = vmatpush1.msra.mxu0 %v60
    %101 = vmatprep.subr.mxu0 0.0
    %102 = vmatpush1.msra.mxu0 %v59
    %103 = vmatprep.subr.mxu0 0.0
    %104 = vmatpush1.msra.mxu0 %v58
    %105 = vmatprep.subr.mxu0 0.0
    %106 = vmatpush1.msra.mxu0 %v57
    %107 = vmatprep.subr.mxu0 0.0
    %108 = vmatpush1.msra.mxu0 %v56
    %109 = vmatprep.subr.mxu0 0.0
    %110 = vmatpush1.msra.mxu0 %v55
    %111 = vmatprep.subr.mxu0 0.0
    %112 = vmatpush2.msra.mxu0 0.0
    %113 = vmatprep.subr.mxu0 0.0
    %114 = vmatpush2.msra.mxu0 0.0
    %115 = vmatprep.subr.mxu0 0.0
    %116 = vmatpush2.msra.mxu0 0.0
    %117 = vmatprep.subr.mxu0 0.0
    %118 = vmatpush2.msra.mxu0 0.0
    %119 = vmatprep.subr.mxu0 0.0
    %120 = vmatpush2.msra.mxu0 0.0
    %121 = vmatprep.subr.mxu0 0.0
    %122 = vmatpush2.msra.mxu0 0.0
    %123 = vmatprep.subr.mxu0 0.0
    %124 = vmatpush2.msra.mxu0 0.0
    %125 = vmatprep.subr.mxu0 0.0
    %126 = vmatpush2.msra.mxu0 0.0
    %127 = vmatprep.subr.mxu0 0.0
    %128 = vmatpush2.msra.mxu0 0.0
    %129 = vmatprep.subr.mxu0 0.0
    %130 = vmatpush2.msra.mxu0 0.0
    %131 = vmatprep.subr.mxu0 0.0
    %132 = vmatpush2.msra.mxu0 0.0
    %133 = vmatprep.subr.mxu0 0.0
    %134 = vmatpush2.msra.mxu0 0.0
    %135 = vmatprep.subr.mxu0 0.0
    %136 = vmatpush2.msra.mxu0 0.0
    %137 = vmatprep.subr.mxu0 0.0
    %138 = vmatpush2.msra.mxu0 0.0
    %139 = vmatprep.subr.mxu0 0.0
    %140 = vmatpush2.msra.mxu0 0.0
    %141 = vmatprep.subr.mxu0 0.0
    %142 = vmatpush2.msra.mxu0 0.0
    %143 = vmatprep.mubr.f32.mxu0 0.0
    %144 = vmatmul.mubr.f32.gmra.mxu0 %v73
    %v145 = vpop.f32.mrf.mxu0
    %v146 = vadd.f32 %v69, %v145
    %v147 = vpop.f32.mrf.mxu0
    %148 = vdwg.mxu0
    %v149 = vmax.f32 %v146, 0.0
    %v150 = vld [vmem:[%s4] sm:$0x1]
    %v152 = vlaneseq
    %v153 = vshrl.u32 %v152, 7
    %v154 = vsub.s32 0, %v153
    %v155 = vrot.slane %v150, %v154
    %v157 = vmul.f32 %v149, %v155
    %v158 = vld [vmem:[%s5] sm:$0x1]
    %v160 = vlaneseq
    %v161 = vshrl.u32 %v160, 7
    %v162 = vsub.s32 0, %v161
    %v163 = vrot.slane %v158, %v162
    %v165 = vadd.f32 %v157, %v163
    %v166 = vld [vmem:[%s6] sm:$0xff]
    %v167 = vld [vmem:[%s6 + $0x8] sm:$0xff]
    %v168 = vld [vmem:[%s6 + $0x10] sm:$0xff]
    %v169 = vld [vmem:[%s6 + $0x18] sm:$0xff]
    %v170 = vld [vmem:[%s7] sm:$0x1]
    %v172 = vlaneseq
    %v173 = vshrl.u32 %v172, 7
    %v174 = vsub.s32 0, %v173
    %v175 = vrot.slane %v170, %v174
    %vm177 = vcmask 261120
    %v179 = vsel %vm177, %v165, 0
    %181 = vmatprep.subr.mxu0 0.0
    %182 = vmatpush1.msra.mxu0 0.0
    %183 = vmatprep.subr.mxu0 0.0
    %184 = vmatpush1.msra.mxu0 0.0
    %185 = vmatprep.subr.mxu0 0.0
    %186 = vmatpush1.msra.mxu0 0.0
    %187 = vmatprep.subr.mxu0 0.0
    %188 = vmatpush1.msra.mxu0 0.0
    %189 = vmatprep.subr.mxu0 0.0
    %190 = vmatpush1.msra.mxu0 0.0
    %191 = vmatprep.subr.mxu0 0.0
    %192 = vmatpush1.msra.mxu0 0.0
    %193 = vmatprep.subr.mxu0 0.0
    %194 = vmatpush1.msra.mxu0 0.0
    %195 = vmatprep.subr.mxu0 0.0
    %196 = vmatpush1.msra.mxu0 0.0
    %197 = vmatprep.subr.mxu0 0.0
    %198 = vmatpush1.msra.mxu0 0.0
    %199 = vmatprep.subr.mxu0 0.0
    %200 = vmatpush1.msra.mxu0 0.0
    %201 = vmatprep.subr.mxu0 0.0
    %202 = vmatpush1.msra.mxu0 0.0
    %203 = vmatprep.subr.mxu0 0.0
    %204 = vmatpush1.msra.mxu0 0.0
    %205 = vmatprep.subr.mxu0 0.0
    %206 = vmatpush1.msra.mxu0 %v169
    %207 = vmatprep.subr.mxu0 0.0
    %208 = vmatpush1.msra.mxu0 %v168
    %209 = vmatprep.subr.mxu0 0.0
    %210 = vmatpush1.msra.mxu0 %v167
    %211 = vmatprep.subr.mxu0 0.0
    %212 = vmatpush1.msra.mxu0 %v166
    %213 = vmatprep.subr.mxu0 0.0
    %214 = vmatpush2.msra.mxu0 0.0
    %215 = vmatprep.subr.mxu0 0.0
    %216 = vmatpush2.msra.mxu0 0.0
    %217 = vmatprep.subr.mxu0 0.0
    %218 = vmatpush2.msra.mxu0 0.0
    %219 = vmatprep.subr.mxu0 0.0
    %220 = vmatpush2.msra.mxu0 0.0
    %221 = vmatprep.subr.mxu0 0.0
    %222 = vmatpush2.msra.mxu0 0.0
    %223 = vmatprep.subr.mxu0 0.0
    %224 = vmatpush2.msra.mxu0 0.0
    %225 = vmatprep.subr.mxu0 0.0
    %226 = vmatpush2.msra.mxu0 0.0
    %227 = vmatprep.subr.mxu0 0.0
    %228 = vmatpush2.msra.mxu0 0.0
    %229 = vmatprep.subr.mxu0 0.0
    %230 = vmatpush2.msra.mxu0 0.0
    %231 = vmatprep.subr.mxu0 0.0
    %232 = vmatpush2.msra.mxu0 0.0
    %233 = vmatprep.subr.mxu0 0.0
    %234 = vmatpush2.msra.mxu0 0.0
    %235 = vmatprep.subr.mxu0 0.0
    %236 = vmatpush2.msra.mxu0 0.0
    %237 = vmatprep.subr.mxu0 0.0
    %238 = vmatpush2.msra.mxu0 0.0
    %239 = vmatprep.subr.mxu0 0.0
    %240 = vmatpush2.msra.mxu0 0.0
    %241 = vmatprep.subr.mxu0 0.0
    %242 = vmatpush2.msra.mxu0 0.0
    %243 = vmatprep.subr.mxu0 0.0
    %244 = vmatpush2.msra.mxu0 0.0
    %245 = vmatprep.mubr.f32.mxu0 0.0
    %246 = vmatmul.mubr.f32.gmra.mxu0 %v179
    %v247 = vpop.f32.mrf.mxu0
    %v248 = vadd.f32 %v175, %v247
    %v249 = vpop.f32.mrf.mxu0
    %250 = vdwg.mxu0
    %v251 = vmax.f32 %v248, 0.0
    %252 = vst [vmem:[#allocation2] sm:$0xff] %v251
    %v253 = vld [vmem:[%s8] sm:$0xff]
    %v254 = vld [vmem:[%s8 + $0x8] sm:$0xff]
    %v255 = vld [vmem:[%s8 + $0x10] sm:$0xff]
    %v256 = vld [vmem:[%s8 + $0x18] sm:$0xff]
    %v257 = vld [vmem:[%s8 + $0x20] sm:$0xff]
    %v258 = vld [vmem:[%s8 + $0x28] sm:$0xff]
    %v259 = vld [vmem:[%s8 + $0x30] sm:$0xff]
    %v260 = vld [vmem:[%s8 + $0x38] sm:$0xff]
    %v261 = vld [vmem:[%s8 + $0x40] sm:$0x3f]
    %v262 = vld [vmem:[%s9] sm:$0xff]
    %v263 = vld [vmem:[%s9 + $0x8] sm:$0xff]
    %v264 = vld [vmem:[%s9 + $0x10] sm:$0xff]
    %v265 = vld [vmem:[%s9 + $0x18] sm:$0xff]
    %v266 = vld [vmem:[%s9 + $0x20] sm:$0xff]
    %v267 = vld [vmem:[%s9 + $0x28] sm:$0xff]
    %v268 = vld [vmem:[%s9 + $0x30] sm:$0xff]
    %v269 = vld [vmem:[%s9 + $0x38] sm:$0xff]
    %v270 = vld [vmem:[%s9 + $0x40] sm:$0xff]
    %v271 = vld [vmem:[%s9 + $0x48] sm:$0xff]
    %v272 = vld [vmem:[%s9 + $0x50] sm:$0xff]
    %v273 = vld [vmem:[%s9 + $0x58] sm:$0xff]
    %v274 = vld [vmem:[%s9 + $0x60] sm:$0xff]
    %v275 = vld [vmem:[%s9 + $0x68] sm:$0xff]
    %v276 = vld [vmem:[%s9 + $0x70] sm:$0xff]
    %v277 = vld [vmem:[%s9 + $0x78] sm:$0xff]
    %278 = vmatprep.subr.mxu0 0.0
    %279 = vmatpush1.msra.mxu0 %v277
    %280 = vmatprep.subr.mxu0 0.0
    %281 = vmatpush1.msra.mxu0 %v276
    %282 = vmatprep.subr.mxu0 0.0
    %283 = vmatpush1.msra.mxu0 %v275
    %284 = vmatprep.subr.mxu0 0.0
    %285 = vmatpush1.msra.mxu0 %v274
    %286 = vmatprep.subr.mxu0 0.0
    %287 = vmatpush1.msra.mxu0 %v273
    %288 = vmatprep.subr.mxu0 0.0
    %289 = vmatpush1.msra.mxu0 %v272
    %290 = vmatprep.subr.mxu0 0.0
    %291 = vmatpush1.msra.mxu0 %v271
    %292 = vmatprep.subr.mxu0 0.0
    %293 = vmatpush1.msra.mxu0 %v270
    %294 = vmatprep.subr.mxu0 0.0
    %295 = vmatpush1.msra.mxu0 %v269
    %296 = vmatprep.subr.mxu0 0.0
    %297 = vmatpush1.msra.mxu0 %v268
    %298 = vmatprep.subr.mxu0 0.0
    %299 = vmatpush1.msra.mxu0 %v267
    %300 = vmatprep.subr.mxu0 0.0
    %301 = vmatpush1.msra.mxu0 %v266
    %302 = vmatprep.subr.mxu0 0.0
    %303 = vmatpush1.msra.mxu0 %v265
    %304 = vmatprep.subr.mxu0 0.0
    %305 = vmatpush1.msra.mxu0 %v264
    %306 = vmatprep.subr.mxu0 0.0
    %307 = vmatpush1.msra.mxu0 %v263
    %308 = vmatprep.subr.mxu0 0.0
    %309 = vmatpush1.msra.mxu0 %v262
    %310 = vmatprep.subr.mxu0 0.0
    %311 = vmatpush2.msra.mxu0 0.0
    %312 = vmatprep.subr.mxu0 0.0
    %313 = vmatpush2.msra.mxu0 0.0
    %314 = vmatprep.subr.mxu0 0.0
    %315 = vmatpush2.msra.mxu0 0.0
    %316 = vmatprep.subr.mxu0 0.0
    %317 = vmatpush2.msra.mxu0 0.0
    %318 = vmatprep.subr.mxu0 0.0
    %319 = vmatpush2.msra.mxu0 0.0
    %320 = vmatprep.subr.mxu0 0.0
    %321 = vmatpush2.msra.mxu0 0.0
    %322 = vmatprep.subr.mxu0 0.0
    %323 = vmatpush2.msra.mxu0 0.0
    %324 = vmatprep.subr.mxu0 0.0
    %325 = vmatpush2.msra.mxu0 0.0
    %326 = vmatprep.subr.mxu0 0.0
    %327 = vmatpush2.msra.mxu0 0.0
    %328 = vmatprep.subr.mxu0 0.0
    %329 = vmatpush2.msra.mxu0 0.0
    %330 = vmatprep.subr.mxu0 0.0
    %331 = vmatpush2.msra.mxu0 0.0
    %332 = vmatprep.subr.mxu0 0.0
    %333 = vmatpush2.msra.mxu0 0.0
    %334 = vmatprep.subr.mxu0 0.0
    %335 = vmatpush2.msra.mxu0 0.0
    %336 = vmatprep.subr.mxu0 0.0
    %337 = vmatpush2.msra.mxu0 0.0
    %338 = vmatprep.subr.mxu0 0.0
    %339 = vmatpush2.msra.mxu0 0.0
    %340 = vmatprep.subr.mxu0 0.0
    %341 = vmatpush2.msra.mxu0 0.0
    %342 = vmatprep.mubr.f32.mxu0 0.0
    %343 = vmatmul.mubr.f32.gmra.mxu0 %v251
    %v344 = vpop.f32.mrf.mxu0
    %v345 = vadd.f32 0.0, %v344
    %v346 = vpop.f32.mrf.mxu0
    %347 = vdwg.mxu0
    %v349 = vsel %vm75, %v261, 0
    %351 = vmatprep.subr.mxu0 0.0
    %352 = vmatpush1.msra.mxu0 0.0
    %353 = vmatprep.subr.mxu0 0.0
    %354 = vmatpush1.msra.mxu0 0.0
    %355 = vmatprep.subr.mxu0 0.0
    %356 = vmatpush1.msra.mxu0 0.0
    %357 = vmatprep.subr.mxu0 0.0
    %358 = vmatpush1.msra.mxu0 0.0
    %359 = vmatprep.subr.mxu0 0.0
    %360 = vmatpush1.msra.mxu0 0.0
    %361 = vmatprep.subr.mxu0 0.0
    %362 = vmatpush1.msra.mxu0 0.0
    %363 = vmatprep.subr.mxu0 0.0
    %364 = vmatpush1.msra.mxu0 0.0
    %365 = vmatprep.subr.mxu0 0.0
    %366 = vmatpush1.msra.mxu0 %v349
    %367 = vmatprep.subr.mxu0 0.0
    %368 = vmatpush1.msra.mxu0 %v260
    %369 = vmatprep.subr.mxu0 0.0
    %370 = vmatpush1.msra.mxu0 %v259
    %371 = vmatprep.subr.mxu0 0.0
    %372 = vmatpush1.msra.mxu0 %v258
    %373 = vmatprep.subr.mxu0 0.0
    %374 = vmatpush1.msra.mxu0 %v257
    %375 = vmatprep.subr.mxu0 0.0
    %376 = vmatpush1.msra.mxu0 %v256
    %377 = vmatprep.subr.mxu0 0.0
    %378 = vmatpush1.msra.mxu0 %v255
    %379 = vmatprep.subr.mxu0 0.0
    %380 = vmatpush1.msra.mxu0 %v254
    %381 = vmatprep.subr.mxu0 0.0
    %382 = vmatpush1.msra.mxu0 %v253
    %383 = vmatprep.subr.mxu0 0.0
    %384 = vmatpush2.msra.mxu0 0.0
    %385 = vmatprep.subr.mxu0 0.0
    %386 = vmatpush2.msra.mxu0 0.0
    %387 = vmatprep.subr.mxu0 0.0
    %388 = vmatpush2.msra.mxu0 0.0
    %389 = vmatprep.subr.mxu0 0.0
    %390 = vmatpush2.msra.mxu0 0.0
    %391 = vmatprep.subr.mxu0 0.0
    %392 = vmatpush2.msra.mxu0 0.0
    %393 = vmatprep.subr.mxu0 0.0
    %394 = vmatpush2.msra.mxu0 0.0
    %395 = vmatprep.subr.mxu0 0.0
    %396 = vmatpush2.msra.mxu0 0.0
    %397 = vmatprep.subr.mxu0 0.0
    %398 = vmatpush2.msra.mxu0 0.0
    %399 = vmatprep.subr.mxu0 0.0
    %400 = vmatpush2.msra.mxu0 0.0
    %401 = vmatprep.subr.mxu0 0.0
    %402 = vmatpush2.msra.mxu0 0.0
    %403 = vmatprep.subr.mxu0 0.0
    %404 = vmatpush2.msra.mxu0 0.0
    %405 = vmatprep.subr.mxu0 0.0
    %406 = vmatpush2.msra.mxu0 0.0
    %407 = vmatprep.subr.mxu0 0.0
    %408 = vmatpush2.msra.mxu0 0.0
    %409 = vmatprep.subr.mxu0 0.0
    %410 = vmatpush2.msra.mxu0 0.0
    %411 = vmatprep.subr.mxu0 0.0
    %412 = vmatpush2.msra.mxu0 0.0
    %413 = vmatprep.subr.mxu0 0.0
    %414 = vmatpush2.msra.mxu0 0.0
    %415 = vmatprep.mubr.f32.mxu0 0.0
    %416 = vmatmul.mubr.f32.gmra.mxu0 %v73
    %v417 = vpop.f32.mrf.mxu0
    %v418 = vadd.f32 %v345, %v417
    %v419 = vpop.f32.mrf.mxu0
    %420 = vdwg.mxu0
    %v421 = vld [vmem:[%s10] sm:$0x1]
    %v423 = vlaneseq
    %v424 = vshrl.u32 %v423, 7
    %v425 = vsub.s32 0, %v424
    %v426 = vrot.slane %v421, %v425
    %v428 = vadd.f32 %v418, %v426
    %v429 = vmax.f32 %v428, 0.0
    %v430 = vld [vmem:[%s11] sm:$0x1]
    %v432 = vlaneseq
    %v433 = vshrl.u32 %v432, 7
    %v434 = vsub.s32 0, %v433
    %v435 = vrot.slane %v430, %v434
    %v437 = vmul.f32 %v429, %v435
    %v438 = vld [vmem:[%s12] sm:$0x1]
    %v440 = vlaneseq
    %v441 = vshrl.u32 %v440, 7
    %v442 = vsub.s32 0, %v441
    %v443 = vrot.slane %v438, %v442
    %v445 = vadd.f32 %v437, %v443
    %v446 = vld [vmem:[%s13] sm:$0xff]
    %v447 = vld [vmem:[%s13 + $0x8] sm:$0xff]
    %v448 = vld [vmem:[%s13 + $0x10] sm:$0xff]
    %v449 = vld [vmem:[%s13 + $0x18] sm:$0xff]
    %v450 = vld [vmem:[%s13 + $0x20] sm:$0xff]
    %v451 = vld [vmem:[%s13 + $0x28] sm:$0xff]
    %v452 = vld [vmem:[%s13 + $0x30] sm:$0xff]
    %v453 = vld [vmem:[%s13 + $0x38] sm:$0xff]
    %v454 = vld [vmem:[%s14] sm:$0x1]
    %v456 = vlaneseq
    %v457 = vshrl.u32 %v456, 7
    %v458 = vsub.s32 0, %v457
    %v459 = vrot.slane %v454, %v458
    %vm461 = vcmask 523264
    %v463 = vsel %vm461, %v445, 0
    %465 = vmatprep.subr.mxu0 0.0
    %466 = vmatpush1.msra.mxu0 0.0
    %467 = vmatprep.subr.mxu0 0.0
    %468 = vmatpush1.msra.mxu0 0.0
    %469 = vmatprep.subr.mxu0 0.0
    %470 = vmatpush1.msra.mxu0 0.0
    %471 = vmatprep.subr.mxu0 0.0
    %472 = vmatpush1.msra.mxu0 0.0
    %473 = vmatprep.subr.mxu0 0.0
    %474 = vmatpush1.msra.mxu0 0.0
    %475 = vmatprep.subr.mxu0 0.0
    %476 = vmatpush1.msra.mxu0 0.0
    %477 = vmatprep.subr.mxu0 0.0
    %478 = vmatpush1.msra.mxu0 0.0
    %479 = vmatprep.subr.mxu0 0.0
    %480 = vmatpush1.msra.mxu0 0.0
    %481 = vmatprep.subr.mxu0 0.0
    %482 = vmatpush1.msra.mxu0 %v453
    %483 = vmatprep.subr.mxu0 0.0
    %484 = vmatpush1.msra.mxu0 %v452
    %485 = vmatprep.subr.mxu0 0.0
    %486 = vmatpush1.msra.mxu0 %v451
    %487 = vmatprep.subr.mxu0 0.0
    %488 = vmatpush1.msra.mxu0 %v450
    %489 = vmatprep.subr.mxu0 0.0
    %490 = vmatpush1.msra.mxu0 %v449
    %491 = vmatprep.subr.mxu0 0.0
    %492 = vmatpush1.msra.mxu0 %v448
    %493 = vmatprep.subr.mxu0 0.0
    %494 = vmatpush1.msra.mxu0 %v447
    %495 = vmatprep.subr.mxu0 0.0
    %496 = vmatpush1.msra.mxu0 %v446
    %497 = vmatprep.subr.mxu0 0.0
    %498 = vmatpush2.msra.mxu0 0.0
    %499 = vmatprep.subr.mxu0 0.0
    %500 = vmatpush2.msra.mxu0 0.0
    %501 = vmatprep.subr.mxu0 0.0
    %502 = vmatpush2.msra.mxu0 0.0
    %503 = vmatprep.subr.mxu0 0.0
    %504 = vmatpush2.msra.mxu0 0.0
    %505 = vmatprep.subr.mxu0 0.0
    %506 = vmatpush2.msra.mxu0 0.0
    %507 = vmatprep.subr.mxu0 0.0
    %508 = vmatpush2.msra.mxu0 0.0
    %509 = vmatprep.subr.mxu0 0.0
    %510 = vmatpush2.msra.mxu0 0.0
    %511 = vmatprep.subr.mxu0 0.0
    %512 = vmatpush2.msra.mxu0 0.0
    %513 = vmatprep.subr.mxu0 0.0
    %514 = vmatpush2.msra.mxu0 0.0
    %515 = vmatprep.subr.mxu0 0.0
    %516 = vmatpush2.msra.mxu0 0.0
    %517 = vmatprep.subr.mxu0 0.0
    %518 = vmatpush2.msra.mxu0 0.0
    %519 = vmatprep.subr.mxu0 0.0
    %520 = vmatpush2.msra.mxu0 0.0
    %521 = vmatprep.subr.mxu0 0.0
    %522 = vmatpush2.msra.mxu0 0.0
    %523 = vmatprep.subr.mxu0 0.0
    %524 = vmatpush2.msra.mxu0 0.0
    %525 = vmatprep.subr.mxu0 0.0
    %526 = vmatpush2.msra.mxu0 0.0
    %527 = vmatprep.subr.mxu0 0.0
    %528 = vmatpush2.msra.mxu0 0.0
    %529 = vmatprep.mubr.f32.mxu0 0.0
    %530 = vmatmul.mubr.f32.gmra.mxu0 %v463
    %v531 = vpop.f32.mrf.mxu0
    %v532 = vadd.f32 %v459, %v531
    %v533 = vpop.f32.mrf.mxu0
    %534 = vdwg.mxu0
    %v535 = vmax.f32 %v532, 0.0
    %v536 = vlaneseq
    %v537 = vshrl.u32 %v536, 7
    %v538 = vld [vmem:[%s0] sm:$0x1]
    %v539 = vlaneseq
    %v540 = vshrl.u32 %v539, 7
    %v541 = vsub.s32 0, %v540
    %v542 = vrot.slane %v538, %v541
    %vm543 = vcmp.eq.s32.totalorder %v537, %v542
    %v544 = vsel %vm543, 1, 0
    %v545 = vcvt.s32.f32 %v544
    %vm546 = vcmask 64512
    %v548 = vsel %vm546, %v545, 0
    %550 = vmatprep.subr.mxu0 0.0
    %551 = vmatpush1.msra.mxu0 0.0
    %552 = vmatprep.subr.mxu0 0.0
    %553 = vmatpush1.msra.mxu0 0.0
    %554 = vmatprep.subr.mxu0 0.0
    %555 = vmatpush1.msra.mxu0 0.0
    %556 = vmatprep.subr.mxu0 0.0
    %557 = vmatpush1.msra.mxu0 0.0
    %558 = vmatprep.subr.mxu0 0.0
    %559 = vmatpush1.msra.mxu0 0.0
    %560 = vmatprep.subr.mxu0 0.0
    %561 = vmatpush1.msra.mxu0 0.0
    %562 = vmatprep.subr.mxu0 0.0
    %563 = vmatpush1.msra.mxu0 0.0
    %564 = vmatprep.subr.mxu0 0.0
    %565 = vmatpush1.msra.mxu0 0.0
    %566 = vmatprep.subr.mxu0 0.0
    %567 = vmatpush1.msra.mxu0 0.0
    %568 = vmatprep.subr.mxu0 0.0
    %569 = vmatpush1.msra.mxu0 0.0
    %570 = vmatprep.subr.mxu0 0.0
    %571 = vmatpush1.msra.mxu0 0.0
    %572 = vmatprep.subr.mxu0 0.0
    %573 = vmatpush1.msra.mxu0 0.0
    %574 = vmatprep.subr.mxu0 0.0
    %575 = vmatpush1.msra.mxu0 0.0
    %576 = vmatprep.subr.mxu0 0.0
    %577 = vmatpush1.msra.mxu0 0.0
    %578 = vmatprep.subr.mxu0 0.0
    %579 = vmatpush1.msra.mxu0 0.0
    %580 = vmatprep.subr.mxu0 0.0
    %581 = vmatpush1.msra.mxu0 %v535
    %582 = vmatprep.subr.mxu0 0.0
    %583 = vmatpush2.msra.mxu0 0.0
    %584 = vmatprep.subr.mxu0 0.0
    %585 = vmatpush2.msra.mxu0 0.0
    %586 = vmatprep.subr.mxu0 0.0
    %587 = vmatpush2.msra.mxu0 0.0
    %588 = vmatprep.subr.mxu0 0.0
    %589 = vmatpush2.msra.mxu0 0.0
    %590 = vmatprep.subr.mxu0 0.0
    %591 = vmatpush2.msra.mxu0 0.0
    %592 = vmatprep.subr.mxu0 0.0
    %593 = vmatpush2.msra.mxu0 0.0
    %594 = vmatprep.subr.mxu0 0.0
    %595 = vmatpush2.msra.mxu0 0.0
    %596 = vmatprep.subr.mxu0 0.0
    %597 = vmatpush2.msra.mxu0 0.0
    %598 = vmatprep.subr.mxu0 0.0
    %599 = vmatpush2.msra.mxu0 0.0
    %600 = vmatprep.subr.mxu0 0.0
    %601 = vmatpush2.msra.mxu0 0.0
    %602 = vmatprep.subr.mxu0 0.0
    %603 = vmatpush2.msra.mxu0 0.0
    %604 = vmatprep.subr.mxu0 0.0
    %605 = vmatpush2.msra.mxu0 0.0
    %606 = vmatprep.subr.mxu0 0.0
    %607 = vmatpush2.msra.mxu0 0.0
    %608 = vmatprep.subr.mxu0 0.0
    %609 = vmatpush2.msra.mxu0 0.0
    %610 = vmatprep.subr.mxu0 0.0
    %611 = vmatpush2.msra.mxu0 0.0
    %612 = vmatprep.subr.mxu0 0.0
    %613 = vmatpush2.msra.mxu0 0.0
    %614 = vmatprep.mubr.f32.mxu0 0.0
    %615 = vmatmul.mubr.f32.gmra.mxu0 %v548
    %v616 = vpop.f32.mrf.mxu0
    %v617 = vadd.f32 0.0, %v616
    %v618 = vpop.f32.mrf.mxu0
    %619 = vdwg.mxu0
    %p620 = scmp.eq.s32.totalorder 0, 0
    // Predicated region
    $region62: #{tpu_custom_call.1} parent=1 // pred_check
      %p621 = pneg %p620
    $region63: #{tpu_custom_call.1} parent=1 // pred_check_branch
      %623 = sbr.rel (%p621) target = $region65
    $region64: #{tpu_custom_call.1} parent=1 // pred_region
      %vm624 = vcmask 257024
      %625 = vst.msk [vmem:[#allocation4] sm:$0xf] %vm624, %v617
    $region65: #{tpu_custom_call.1} parent=1 // pred_fallthru
      _
    %p626 = scmp.ne.s32.totalorder 0, 0
    // Predicated region
    $region66: #{tpu_custom_call.1} parent=1 // pred_check
      %p627 = pneg %p626
    $region67: #{tpu_custom_call.1} parent=1 // pred_check_branch
      %629 = sbr.rel (%p627) target = $region69
    $region68: #{tpu_custom_call.1} parent=1 // pred_region
      %v630 = vld [vmem:[#allocation4] sm:$0xf]
      %v631 = vadd.f32 %v630, %v617
      %vm632 = vcmask 257024
      %633 = vst.msk [vmem:[#allocation4] sm:$0xf] %vm632, %v631
    $region69: #{tpu_custom_call.1} parent=1 // pred_fallthru
      _
    // Predicated region
    $region70: #{tpu_custom_call.1} parent=1 // pred_check
      _
    $region71: #{tpu_custom_call.1} parent=1 // pred_check_branch
      %635 = sbr.rel (0) target = $region73
    $region72: #{tpu_custom_call.1} parent=1 // pred_region
      %s637 = ssub.s32 128, 128
      %638 = vsyncadd [#allocation3], %s637
      %s640 = sshll.u32 [#allocation2], 4
      %s641 = int_to_ptr.vmem [resolvable:$true] %s640
      %643 = dma.vmem_to_hbm [thread:$0]  %s641, 128, %s15, [#allocation3]
    $region73: #{tpu_custom_call.1} parent=1 // pred_fallthru
      _
    // Predicated region
    $region74: #{tpu_custom_call.1} parent=1 // pred_check
      _
    $region75: #{tpu_custom_call.1} parent=1 // pred_check_branch
      %645 = sbr.rel (0) target = $region77
    $region76: #{tpu_custom_call.1} parent=1 // pred_region
      %s647 = ssub.s32 64, 64
      %648 = vsyncadd [#allocation5], %s647
      %s650 = sshll.u32 [#allocation4], 4
      %s651 = int_to_ptr.vmem [resolvable:$true] %s650
      %653 = dma.vmem_to_hbm [thread:$0]  %s651, 64, %s16, [#allocation5]
    $region77: #{tpu_custom_call.1} parent=1 // pred_fallthru
      _
    // Predicated region
    $region78: #{tpu_custom_call.1} parent=1 // pred_check
      _
    $region79: #{tpu_custom_call.1} parent=1 // pred_check_branch
      %655 = sbr.rel (0) target = $region81
    $region80: #{tpu_custom_call.1} parent=1 // pred_region
      %656 = dma.done [#allocation3], 128
    $region81: #{tpu_custom_call.1} parent=1 // pred_fallthru
      _
    // Predicated region
    $region82: #{tpu_custom_call.1} parent=1 // pred_check
      _
    $region83: #{tpu_custom_call.1} parent=1 // pred_check_branch
      %658 = sbr.rel (0) target = $region85
    $region84: #{tpu_custom_call.1} parent=1 // pred_region
      %659 = dma.done [#allocation5], 64
    $region85: #{tpu_custom_call.1} parent=1 // pred_fallthru
      _
    %660 = vsyncpa [#allocation3], 1
    %661 = vsyncpa [#allocation5], 1

</llo_original>
